<compile_context>
chip_gen: v7x
topology: tpu7x:2x2x1
jax: 0.10.0
libtpu: 0.0.40
codegen_flags: <defaults>
</compile_context>

<pallas_src>
import jax
import jax.numpy as jnp
from jax import lax
from jax.experimental import pallas as pl
from jax.experimental.pallas import tpu as pltpu

_SUBLANE = 8


def _make_kernel(emit_scores):
    def kernel(enc_ref, dec_ref, enc_mask_ref, dec_mask_ref, *out_refs):
        # Per-tile views:
        #   enc      (S_enc, H)  bf16 -- resident for the whole batch element
        #   dec      (T_dec, H)  bf16
        #   enc_mask (1, S_enc)  f32
        #   dec_mask (T_dec, 1)  f32
        weighted_ref = out_refs[0]
        enc = enc_ref[0]
        dec = dec_ref[0]
        enc_mask = enc_mask_ref[0]
        dec_mask = dec_mask_ref[0]

        # Raw attention logits as an NT matmul (contract over H): bf16 x bf16
        # operands at native MXU rate, f32 accumulation, no transposed copy.
        logits = lax.dot_general(
            dec, enc,
            dimension_numbers=(((1,), (1,)), ((), ())),
            preferred_element_type=jnp.float32)

        # Mask padded encoder positions before the softmax.
        logits = jnp.where(enc_mask > 0.5, logits, jnp.float32(-1e9))

        # Numerically-stable softmax over encoder positions.  The decoder mask
        # is folded into the (T_dec, 1) scale: one tiny VPU multiply instead of
        # a (T_dec, S_enc)-wide one, and the weighted sum inherits the masking.
        m = jnp.max(logits, axis=-1, keepdims=True)
        p = jnp.exp(logits - m)
        denom = jnp.sum(p, axis=-1, keepdims=True)
        scale = pl.reciprocal(denom, approx=True) * dec_mask   # EUP slot
        attn = p * scale

        # Weighted sum of encoder states: bf16 x bf16 on the MXU, f32 acc.
        weighted = jnp.dot(attn.astype(enc.dtype), enc,
                           preferred_element_type=jnp.float32)

        weighted_ref[0] = weighted.astype(weighted_ref.dtype)
        if emit_scores:
            scores_ref = out_refs[1]
            scores_ref[0] = attn.astype(scores_ref.dtype)

    return kernel


def _round_up(x, m):
    return ((x + m - 1) // m) * m


def _vmem_capacity_bytes():
    # 64 MiB (v7x per-TensorCore) is the most restrictive production value;
    # used as the fallback when the query is unavailable (e.g. interpret mode).
    try:
        return int(pltpu.get_tpu_info().vmem_capacity_bytes)
    except Exception:
        return 64 * 1024 * 1024


def _tile_vmem_bytes(t_dec, s_enc, h):
    """Rough VMEM footprint (bytes) of one grid step at decoder tile t_dec."""
    enc_blk = 2 * s_enc * h * 2          # bf16 enc block, double-buffered
    dec_blk = 2 * t_dec * h * 2          # bf16 dec block, double-buffered
    w_blk = 2 * t_dec * h * 4            # f32 weighted block, double-buffered
    s_blk = 2 * t_dec * s_enc * 2        # bf16 scores block, double-buffered
    masks = 2 * (s_enc + t_dec) * 4      # f32 masks, double-buffered
    interm = 3 * t_dec * s_enc * 4       # f32 logits / p / attn live values
    return enc_blk + dec_blk + w_blk + s_blk + masks + interm


def _pick_dec_tile(s_dec, s_enc, h, vmem_budget):
    """Largest sublane-aligned decoder tile (<= 512) fitting the VMEM budget."""
    full = _round_up(s_dec, _SUBLANE)
    if full <= 512 and _tile_vmem_bytes(full, s_enc, h) <= vmem_budget:
        return full
    t = 512
    while t > _SUBLANE and _tile_vmem_bytes(t, s_enc, h) > vmem_budget:
        t //= 2
    return max(t, _SUBLANE)


def global_attention(encoder_output, decoder_gru_output, encoder_mask,
                     decoder_mask, *, return_scores=True,
                     compute_dtype=jnp.bfloat16):
    B, S_enc, H = encoder_output.shape
    _, S_dec, _ = decoder_gru_output.shape

    vmem_cap = _vmem_capacity_bytes()
    vmem_budget = max(int(vmem_cap * 0.45), 16 * 1024 * 1024)
    vmem_limit = max(int(vmem_cap * 0.9), 32 * 1024 * 1024)

    T_dec = _pick_dec_tile(S_dec, S_enc, H, vmem_budget)
    S_dec_p = _round_up(S_dec, T_dec)
    pad = S_dec_p - S_dec
    n_dec_tiles = S_dec_p // T_dec

    # bf16 operands: halves enc/dec HBM traffic and runs the MXU at native
    # bf16 rate on v5e/v6e/v7x (accumulation stays f32 inside the kernel).
    enc = encoder_output.astype(compute_dtype)
    dec = decoder_gru_output.astype(compute_dtype)
    enc_mask3 = encoder_mask.reshape(B, 1, S_enc).astype(jnp.float32)
    dec_mask3 = decoder_mask.reshape(B, S_dec, 1).astype(jnp.float32)
    if pad:
        # Padded decoder rows carry dec_mask == 0 -> zeroed outputs, sliced off.
        dec = jnp.pad(dec, ((0, 0), (0, pad), (0, 0)))
        dec_mask3 = jnp.pad(dec_mask3, ((0, 0), (0, pad), (0, 0)))

    out_shapes = [jax.ShapeDtypeStruct((B, S_dec_p, H), jnp.float32)]
    out_specs = [pl.BlockSpec((1, T_dec, H), lambda b, t: (b, t, 0))]
    if return_scores:
        # bf16 scores: halves the dominant B*S_dec*S_enc writeback traffic.
        out_shapes.append(jax.ShapeDtypeStruct((B, S_dec_p, S_enc), jnp.bfloat16))
        out_specs.append(pl.BlockSpec((1, T_dec, S_enc), lambda b, t: (b, t, 0)))

    grid_spec = pltpu.PrefetchScalarGridSpec(
        num_scalar_prefetch=0,
        grid=(B, n_dec_tiles),
        in_specs=[
            # enc: same block for every decoder tile -> resident per batch.
            pl.BlockSpec((1, S_enc, H), lambda b, t: (b, 0, 0)),
            pl.BlockSpec((1, T_dec, H), lambda b, t: (b, t, 0)),
            pl.BlockSpec((1, 1, S_enc), lambda b, t: (b, 0, 0)),
            pl.BlockSpec((1, T_dec, 1), lambda b, t: (b, t, 0)),
        ],
        out_specs=out_specs,
    )

    outs = pl.pallas_call(
        _make_kernel(return_scores),
        out_shape=tuple(out_shapes),
        grid_spec=grid_spec,
        compiler_params=pltpu.CompilerParams(
            # Batch axis "parallel": on v7x the two TensorCores shard over B,
            # so enc is fetched once per batch element per core.
            dimension_semantics=("parallel", "arbitrary"),
            vmem_limit_bytes=vmem_limit,
        ),
    )(enc, dec, enc_mask3, dec_mask3)

    weighted = outs[0]
    scores = outs[1] if return_scores else None
    if pad:
        weighted = weighted[:, :S_dec, :]
        if return_scores:
            scores = scores[:, :S_dec, :]
    return weighted, scores


def _reference(encoder_output, decoder_gru_output, encoder_mask, decoder_mask):
    """Exact-f32 reference (HIGHEST precision so TPU XLA doesn't use bf16)."""
    enc = encoder_output.astype(jnp.float32)
    dec = decoder_gru_output.astype(jnp.float32)
    logits = jnp.einsum("btd,bsd->bts", dec, enc,
                        precision=lax.Precision.HIGHEST)
    logits = jnp.where(encoder_mask[:, None, :] > 0.5, logits, -1e9)
    attn = jax.nn.softmax(logits, axis=-1)
    weighted = jnp.einsum("bts,bsd->btd", attn, enc,
                          precision=lax.Precision.HIGHEST)
    attn = attn * decoder_mask[:, :, None]
    weighted = weighted * decoder_mask[:, :, None]
    return weighted, attn


if __name__ == "__main__":
    key = jax.random.PRNGKey(0)
    B, S_enc, S_dec, H = 2, 8, 8, 32

    k1, k2 = jax.random.split(key)
    encoder_output = jax.random.normal(k1, (B, S_enc, H), dtype=jnp.float32)
    decoder_gru_output = jax.random.normal(k2, (B, S_dec, H), dtype=jnp.float32)

    # Deterministic padding masks: first batch fully valid, second padded.
    encoder_mask = jnp.array(
        [[1.0] * S_enc,
         [1.0] * (S_enc - 3) + [0.0] * 3], dtype=jnp.float32)
    decoder_mask = jnp.array(
        [[1.0] * S_dec,
         [1.0] * (S_dec - 2) + [0.0] * 2], dtype=jnp.float32)

    weighted, scores = global_attention(
        encoder_output, decoder_gru_output, encoder_mask, decoder_mask)
    jax.block_until_ready((weighted, scores))

    # The kernel consumes bf16-rounded operands (a deliberate perf choice);
    # compare against an exact-f32 reference evaluated on those same rounded
    # inputs.  Remaining deltas: bf16 attn/scores rounding + approx reciprocal.
    enc_rt = encoder_output.astype(jnp.bfloat16).astype(jnp.float32)
    dec_rt = decoder_gru_output.astype(jnp.bfloat16).astype(jnp.float32)
    ref_w, ref_s = _reference(enc_rt, dec_rt, encoder_mask, decoder_mask)

    scores_f32 = scores.astype(jnp.float32)
    assert jnp.allclose(weighted, ref_w, atol=2e-2, rtol=2e-2), (
        "max |dw| = %g" % float(jnp.max(jnp.abs(weighted - ref_w))))
    assert jnp.allclose(scores_f32, ref_s, atol=2e-2, rtol=2e-2), (
        "max |ds| = %g" % float(jnp.max(jnp.abs(scores_f32 - ref_s))))

    print("KERNEL_OK")
</pallas_src>

<mosaic_0001>
module attributes {stable_mosaic.version = 11 : i64} {
  func.func @kernel(%arg0: i32, %arg1: i32, %arg2: memref<1x8x32xbf16, #tpu.memory_space<vmem>>, %arg3: memref<1x8x32xbf16, #tpu.memory_space<vmem>>, %arg4: memref<1x1x8xf32, #tpu.memory_space<vmem>>, %arg5: memref<1x8x1xf32, #tpu.memory_space<vmem>>, %arg6: memref<1x8x32xf32, #tpu.memory_space<vmem>>, %arg7: memref<1x8x8xbf16, #tpu.memory_space<vmem>>) attributes {dimension_semantics = [#tpu.dimension_semantics<parallel>, #tpu.dimension_semantics<arbitrary>], iteration_bounds = array<i64: 2, 1>, scalar_prefetch = 0 : i64, scratch_operands = 0 : i64, tpu.core_type = #tpu.core_type<tc>, window_params = [{transform_indices = @transform_0, window_bounds = array<i64: 1, 8, 32>}, {transform_indices = @transform_1, window_bounds = array<i64: 1, 8, 32>}, {transform_indices = @transform_2, window_bounds = array<i64: 1, 1, 8>}, {transform_indices = @transform_3, window_bounds = array<i64: 1, 8, 1>}, {transform_indices = @transform_4, window_bounds = array<i64: 1, 8, 32>}, {transform_indices = @transform_5, window_bounds = array<i64: 1, 8, 8>}]} {
    %c0 = arith.constant 0 : index
    %c0_0 = arith.constant 0 : index
    %c0_1 = arith.constant 0 : index
    %0 = vector.load %arg2[%c0, %c0_0, %c0_1] : memref<1x8x32xbf16, #tpu.memory_space<vmem>>, vector<1x8x32xbf16>
    %1 = vector.shape_cast %0 : vector<1x8x32xbf16> to vector<8x32xbf16>
    %c0_2 = arith.constant 0 : index
    %c0_3 = arith.constant 0 : index
    %c0_4 = arith.constant 0 : index
    %2 = vector.load %arg3[%c0_2, %c0_3, %c0_4] : memref<1x8x32xbf16, #tpu.memory_space<vmem>>, vector<1x8x32xbf16>
    %3 = vector.shape_cast %2 : vector<1x8x32xbf16> to vector<8x32xbf16>
    %c0_5 = arith.constant 0 : index
    %c0_6 = arith.constant 0 : index
    %c0_7 = arith.constant 0 : index
    %4 = vector.load %arg4[%c0_5, %c0_6, %c0_7] : memref<1x1x8xf32, #tpu.memory_space<vmem>>, vector<1x1x8xf32>
    %5 = vector.shape_cast %4 : vector<1x1x8xf32> to vector<1x8xf32>
    %c0_8 = arith.constant 0 : index
    %c0_9 = arith.constant 0 : index
    %c0_10 = arith.constant 0 : index
    %6 = vector.load %arg5[%c0_8, %c0_9, %c0_10] : memref<1x8x1xf32, #tpu.memory_space<vmem>>, vector<1x8x1xf32>
    %7 = vector.shape_cast %6 : vector<1x8x1xf32> to vector<8x1xf32>
    %cst = arith.constant dense<0.000000e+00> : vector<8x8xf32>
    %8 = tpu.matmul %3, %1, %cst {dimension_numbers = #tpu.dot_dimension_numbers<[1], [1], [0], [0], [0, 0, 1, 0], [], []>} : vector<8x32xbf16>, vector<8x32xbf16>, vector<8x8xf32> -> vector<8x8xf32>
    %cst_11 = arith.constant 5.000000e-01 : f32
    %9 = vector.broadcast %cst_11 : f32 to vector<1x8xf32>
    %10 = arith.cmpf ogt, %5, %9 : vector<1x8xf32>
    %cst_12 = arith.constant -1.000000e+09 : f32
    %11 = vector.shape_cast %10 : vector<1x8xi1> to vector<1x8xi1>
    %12 = vector.broadcast %11 : vector<1x8xi1> to vector<8x8xi1>
    %13 = vector.broadcast %cst_12 : f32 to vector<8x8xf32>
    %14 = arith.select %12, %8, %13 : vector<8x8xi1>, vector<8x8xf32>
    %cst_13 = arith.constant dense<0xFF800000> : vector<8xf32>
    %15 = vector.multi_reduction <maximumf>, %14, %cst_13 [1] : vector<8x8xf32> to vector<8xf32>
    %16 = vector.shape_cast %15 : vector<8xf32> to vector<8x1xf32>
    %17 = vector.broadcast %16 : vector<8x1xf32> to vector<8x8xf32>
    %18 = arith.subf %14, %17 : vector<8x8xf32>
    %19 = math.exp %18 : vector<8x8xf32>
    %cst_14 = arith.constant dense<0.000000e+00> : vector<8xf32>
    %20 = vector.multi_reduction <add>, %19, %cst_14 [1] : vector<8x8xf32> to vector<8xf32>
    %21 = vector.shape_cast %20 : vector<8xf32> to vector<8x1xf32>
    %22 = tpu.reciprocal %21 {approx = true} : vector<8x1xf32> -> vector<8x1xf32>
    %23 = arith.mulf %22, %7 : vector<8x1xf32>
    %24 = vector.broadcast %23 : vector<8x1xf32> to vector<8x8xf32>
    %25 = arith.mulf %19, %24 : vector<8x8xf32>
    %26 = arith.truncf %25 : vector<8x8xf32> to vector<8x8xbf16>
    %cst_15 = arith.constant dense<0.000000e+00> : vector<8x32xf32>
    %27 = tpu.matmul %26, %1, %cst_15 {dimension_numbers = #tpu.dot_dimension_numbers<[1], [0], [0], [1], [0, 0, 1, 1], [], []>} : vector<8x8xbf16>, vector<8x32xbf16>, vector<8x32xf32> -> vector<8x32xf32>
    %c0_16 = arith.constant 0 : index
    %c0_17 = arith.constant 0 : index
    %c0_18 = arith.constant 0 : index
    %28 = vector.load %arg6[%c0_16, %c0_17, %c0_18] : memref<1x8x32xf32, #tpu.memory_space<vmem>>, vector<1x8x32xf32>
    %29 = vector.shape_cast %28 : vector<1x8x32xf32> to vector<8x32xf32>
    %30 = vector.shape_cast %27 : vector<8x32xf32> to vector<1x8x32xf32>
    tpu.vector_store %arg6[%c0_16, %c0_17, %c0_18], %30 {strides = array<i32>} : memref<1x8x32xf32, #tpu.memory_space<vmem>>, vector<1x8x32xf32>,
    %31 = arith.truncf %25 : vector<8x8xf32> to vector<8x8xbf16>
    %c0_19 = arith.constant 0 : index
    %c0_20 = arith.constant 0 : index
    %c0_21 = arith.constant 0 : index
    %32 = vector.load %arg7[%c0_19, %c0_20, %c0_21] : memref<1x8x8xbf16, #tpu.memory_space<vmem>>, vector<1x8x8xbf16>
    %33 = vector.shape_cast %32 : vector<1x8x8xbf16> to vector<8x8xbf16>
    %34 = vector.shape_cast %31 : vector<8x8xbf16> to vector<1x8x8xbf16>
    tpu.vector_store %arg7[%c0_19, %c0_20, %c0_21], %34 {strides = array<i32>} : memref<1x8x8xbf16, #tpu.memory_space<vmem>>, vector<1x8x8xbf16>,
    return
  }
  func.func @transform_0(%arg0: i32, %arg1: i32) -> (i32, i32, i32) {
    %c0_i32 = arith.constant 0 : i32
    %c0_i32_0 = arith.constant 0 : i32
    %c0_i32_1 = arith.constant 0 : i32
    return %arg0, %c0_i32, %c0_i32_0 : i32, i32, i32
  }
  func.func @transform_1(%arg0: i32, %arg1: i32) -> (i32, i32, i32) {
    %c0_i32 = arith.constant 0 : i32
    %c0_i32_0 = arith.constant 0 : i32
    return %arg0, %arg1, %c0_i32 : i32, i32, i32
  }
  func.func @transform_2(%arg0: i32, %arg1: i32) -> (i32, i32, i32) {
    %c0_i32 = arith.constant 0 : i32
    %c0_i32_0 = arith.constant 0 : i32
    %c0_i32_1 = arith.constant 0 : i32
    return %arg0, %c0_i32, %c0_i32_0 : i32, i32, i32
  }
  func.func @transform_3(%arg0: i32, %arg1: i32) -> (i32, i32, i32) {
    %c0_i32 = arith.constant 0 : i32
    %c0_i32_0 = arith.constant 0 : i32
    return %arg0, %arg1, %c0_i32 : i32, i32, i32
  }
  func.func @transform_4(%arg0: i32, %arg1: i32) -> (i32, i32, i32) {
    %c0_i32 = arith.constant 0 : i32
    %c0_i32_0 = arith.constant 0 : i32
    return %arg0, %arg1, %c0_i32 : i32, i32, i32
  }
  func.func @transform_5(%arg0: i32, %arg1: i32) -> (i32, i32, i32) {
    %c0_i32 = arith.constant 0 : i32
    %c0_i32_0 = arith.constant 0 : i32
    return %arg0, %arg1, %c0_i32 : i32, i32, i32
  }
}

</mosaic_0001>

<llo_original>
// kernel: tpu_custom_call.1
$region0: #{tpu_custom_call.1}
  #allocation0 [shape = 'u32[]', space=smem, size = 0x4, offset = 0x4, fixed_abs, tag = 'smem constant byte address 0x4 - core index']
  #allocation1 [shape = 'u32[144,128]{1,0:T(1,128)}', space=vmem, size = 0x12000, scoped, tag = 'internal scratch']
  %s0 = inlined_call_operand.vmem [shape: bf16[2,8,32], index: 0, kind: input, shape index: {}]
  %s1 = inlined_call_operand.vmem [shape: bf16[2,8,32], index: 1, kind: input, shape index: {}]
  %s2 = inlined_call_operand.vmem [shape: f32[2,1,8], index: 2, kind: input, shape index: {}]
  %s3 = inlined_call_operand.vmem [shape: f32[2,8,1], index: 3, kind: input, shape index: {}]
  %s4 = inlined_call_operand.hbm [shape: f32[2,8,32], index: 4, kind: output, shape index: {0}]
  %s5 = inlined_call_operand.hbm [shape: bf16[2,8,8], index: 5, kind: output, shape index: {1}]
  %6 = xla_tuple %s4, %s5
  %s7 = sld [smem:[#allocation0]]
  $region57: #{tpu_custom_call.1} parent=0
    _
  %s9 = ssub.s32 1, %s7
  %s10 = scalar_select 0, %s9, %s7
  $region1: #{tpu_custom_call.1} parent=0
    #allocation2 [shape = 'u8[8192]{0}', space=vmem, size = 0x2000, scoped, tag = 'output window, operand 0']
    #allocation3 [shape = 's32[2]{0}', space=sflag, size = 0x8, scoped, tag = 'scoped memory for tpu_custom_call.1']
    #allocation4 [shape = 'u8[4096]{0}', space=vmem, size = 0x1000, scoped, tag = 'output window, operand 1']
    #allocation5 [shape = 's32[2]{0}', space=sflag, size = 0x8, scoped, tag = 'scoped memory for tpu_custom_call.1']
    %11 = vsyncpa [#allocation3], 0
    %s12 = scalar_lea.sflag [#allocation3], 1
    %13 = vsyncpa %s12, 0
    %14 = vsyncpa [#allocation5], 0
    %s15 = scalar_lea.sflag [#allocation5], 1
    %16 = vsyncpa %s15, 0
    loop: start=0, step=1, limit=4
    $region2: #{tpu_custom_call.1} parent=1 // loop_pre_header
      _
    $region3: #{tpu_custom_call.1} parent=1 // loop_header
      %s18 = sphi 0, %s22
      %p19 = scmp.ge.s32.totalorder %s18, 4
      %s25 = sphi 0, %s37
      %s26 = sphi 0, %s33
      %s27 = sphi 0, %s25
      %s28 = sphi 0, %s26
      %s29 = sphi 0, %s27
      %s30 = sphi 0, %s28
      %s40 = sphi 0, %s42
      %s43 = sphi 0, %s40
      %s44 = sphi 0, %s43
      %s60 = sphi 0, %s44
      %s68 = sphi 0, %s70
      %s71 = sphi 0, %s68
      %s72 = sphi 0, %s71
      %s88 = sphi 0, %s72
      %s94 = sphi 0, %s96
      %s97 = sphi 0, %s94
      %s98 = sphi 0, %s97
      %s114 = sphi 0, %s98
      %s122 = sphi 0, %s124
      %s125 = sphi 0, %s122
      %s126 = sphi 0, %s125
      %s142 = sphi 0, %s126
      %s150 = sphi 0, %s152
      %s153 = sphi 0, %s150
      %s154 = sphi 0, %s153
      %s170 = sphi 0, %s154
      %s178 = sphi 0, %s180
      %s181 = sphi 0, %s178
      %s182 = sphi 0, %s181
      %s198 = sphi 0, %s182
    $region4: #{tpu_custom_call.1} parent=1 // loop_header_branch
      %21 = sbr.rel (%p19) target = $region8
    $region5: #{tpu_custom_call.1} parent=1 // loop_body
      %s23 = ssub.s32 %s18, 1
      %s24 = ssub.s32 %s18, 2
      %s31 = sadd.s32 1, %s26
      %p32 = scmp.ge.s32.totalorder %s31, 1
      %s33 = scalar_select %p32, 0, %s31
      %s34 = sadd.s32 1, %s25
      %s35 = scalar_select %p32, %s34, %s25
      %p36 = scmp.ge.s32.totalorder %s35, 2
      %s37 = scalar_select %p36, 0, %s35
      %s38 = ssub.s32 %s25, %s37
      %p39 = scmp.eq.s32.totalorder %s38, 0
      %s41 = sadd.s32 %s40, 1
      %s42 = scalar_select %p39, %s40, %s41
      %p45 = pneg %p39
      %p46 = scmp.eq.s32.totalorder %s18, 1
      %p47 = por %p45, %p46
      %p48 = scmp.ne.s32.totalorder %s40, %s43
      %p49 = scmp.eq.s32.totalorder %s18, 0
      %p50 = por %p48, %p49
      %p51 = scmp.ne.s32.totalorder %s40, %s43
      %p52 = scmp.eq.s32.totalorder %s23, 1
      %p53 = por %p51, %p52
      %p54 = scmp.ne.s32.totalorder %s43, %s44
      %p55 = scmp.eq.s32.totalorder %s23, 0
      %p56 = por %p54, %p55
      %p57 = scmp.ne.s32.totalorder %s43, %s44
      %p58 = scmp.eq.s32.totalorder %s24, 1
      %p59 = por %p57, %p58
      %p61 = scmp.ne.s32.totalorder %s44, %s60
      %p62 = scmp.eq.s32.totalorder %s24, 0
      %p63 = por %p61, %p62
      %s64 = ssub.s32 %s25, %s37
      %s65 = ssub.s32 %s26, %s33
      %s66 = sor.u32 %s64, %s65
      %p67 = scmp.eq.s32.totalorder %s66, 0
      %s69 = sadd.s32 %s68, 1
      %s70 = scalar_select %p67, %s68, %s69
      %p73 = pneg %p67
      %p74 = scmp.eq.s32.totalorder %s18, 1
      %p75 = por %p73, %p74
      %p76 = scmp.ne.s32.totalorder %s68, %s71
      %p77 = scmp.eq.s32.totalorder %s18, 0
      %p78 = por %p76, %p77
      %p79 = scmp.ne.s32.totalorder %s68, %s71
      %p80 = scmp.eq.s32.totalorder %s23, 1
      %p81 = por %p79, %p80
      %p82 = scmp.ne.s32.totalorder %s71, %s72
      %p83 = scmp.eq.s32.totalorder %s23, 0
      %p84 = por %p82, %p83
      %p85 = scmp.ne.s32.totalorder %s71, %s72
      %p86 = scmp.eq.s32.totalorder %s24, 1
      %p87 = por %p85, %p86
      %p89 = scmp.ne.s32.totalorder %s72, %s88
      %p90 = scmp.eq.s32.totalorder %s24, 0
      %p91 = por %p89, %p90
      %s92 = ssub.s32 %s25, %s37
      %p93 = scmp.eq.s32.totalorder %s92, 0
      %s95 = sadd.s32 %s94, 1
      %s96 = scalar_select %p93, %s94, %s95
      %p99 = pneg %p93
      %p100 = scmp.eq.s32.totalorder %s18, 1
      %p101 = por %p99, %p100
      %p102 = scmp.ne.s32.totalorder %s94, %s97
      %p103 = scmp.eq.s32.totalorder %s18, 0
      %p104 = por %p102, %p103
      %p105 = scmp.ne.s32.totalorder %s94, %s97
      %p106 = scmp.eq.s32.totalorder %s23, 1
      %p107 = por %p105, %p106
      %p108 = scmp.ne.s32.totalorder %s97, %s98
      %p109 = scmp.eq.s32.totalorder %s23, 0
      %p110 = por %p108, %p109
      %p111 = scmp.ne.s32.totalorder %s97, %s98
      %p112 = scmp.eq.s32.totalorder %s24, 1
      %p113 = por %p111, %p112
      %p115 = scmp.ne.s32.totalorder %s98, %s114
      %p116 = scmp.eq.s32.totalorder %s24, 0
      %p117 = por %p115, %p116
      %s118 = ssub.s32 %s25, %s37
      %s119 = ssub.s32 %s26, %s33
      %s120 = sor.u32 %s118, %s119
      %p121 = scmp.eq.s32.totalorder %s120, 0
      %s123 = sadd.s32 %s122, 1
      %s124 = scalar_select %p121, %s122, %s123
      %p127 = pneg %p121
      %p128 = scmp.eq.s32.totalorder %s18, 1
      %p129 = por %p127, %p128
      %p130 = scmp.ne.s32.totalorder %s122, %s125
      %p131 = scmp.eq.s32.totalorder %s18, 0
      %p132 = por %p130, %p131
      %p133 = scmp.ne.s32.totalorder %s122, %s125
      %p134 = scmp.eq.s32.totalorder %s23, 1
      %p135 = por %p133, %p134
      %p136 = scmp.ne.s32.totalorder %s125, %s126
      %p137 = scmp.eq.s32.totalorder %s23, 0
      %p138 = por %p136, %p137
      %p139 = scmp.ne.s32.totalorder %s125, %s126
      %p140 = scmp.eq.s32.totalorder %s24, 1
      %p141 = por %p139, %p140
      %p143 = scmp.ne.s32.totalorder %s126, %s142
      %p144 = scmp.eq.s32.totalorder %s24, 0
      %p145 = por %p143, %p144
      %s146 = ssub.s32 %s25, %s37
      %s147 = ssub.s32 %s26, %s33
      %s148 = sor.u32 %s146, %s147
      %p149 = scmp.eq.s32.totalorder %s148, 0
      %s151 = sadd.s32 %s150, 1
      %s152 = scalar_select %p149, %s150, %s151
      %p155 = pneg %p149
      %p156 = scmp.eq.s32.totalorder %s18, 1
      %p157 = por %p155, %p156
      %p158 = scmp.ne.s32.totalorder %s150, %s153
      %p159 = scmp.eq.s32.totalorder %s18, 0
      %p160 = por %p158, %p159
      %p161 = scmp.ne.s32.totalorder %s150, %s153
      %p162 = scmp.eq.s32.totalorder %s23, 1
      %p163 = por %p161, %p162
      %p164 = scmp.ne.s32.totalorder %s153, %s154
      %p165 = scmp.eq.s32.totalorder %s23, 0
      %p166 = por %p164, %p165
      %p167 = scmp.ne.s32.totalorder %s153, %s154
      %p168 = scmp.eq.s32.totalorder %s24, 1
      %p169 = por %p167, %p168
      %p171 = scmp.ne.s32.totalorder %s154, %s170
      %p172 = scmp.eq.s32.totalorder %s24, 0
      %p173 = por %p171, %p172
      %s174 = ssub.s32 %s25, %s37
      %s175 = ssub.s32 %s26, %s33
      %s176 = sor.u32 %s174, %s175
      %p177 = scmp.eq.s32.totalorder %s176, 0
      %s179 = sadd.s32 %s178, 1
      %s180 = scalar_select %p177, %s178, %s179
      %p183 = pneg %p177
      %p184 = scmp.eq.s32.totalorder %s18, 1
      %p185 = por %p183, %p184
      %p186 = scmp.ne.s32.totalorder %s178, %s181
      %p187 = scmp.eq.s32.totalorder %s18, 0
      %p188 = por %p186, %p187
      %p189 = scmp.ne.s32.totalorder %s178, %s181
      %p190 = scmp.eq.s32.totalorder %s23, 1
      %p191 = por %p189, %p190
      %p192 = scmp.ne.s32.totalorder %s181, %s182
      %p193 = scmp.eq.s32.totalorder %s23, 0
      %p194 = por %p192, %p193
      %p195 = scmp.ne.s32.totalorder %s181, %s182
      %p196 = scmp.eq.s32.totalorder %s24, 1
      %p197 = por %p195, %p196
      %p199 = scmp.ne.s32.totalorder %s182, %s198
      %p200 = scmp.eq.s32.totalorder %s24, 0
      %p201 = por %p199, %p200
      %p202 = scmp.le.s32.totalorder 1, %s18
      %p203 = scmp.lt.s32.totalorder %s18, 3
      %p204 = pnand %p202, %p203
      %p205 = pneg %p204
      // Predicated region
      $region9: #{tpu_custom_call.1} parent=5 // pred_check
        _
      $region10: #{tpu_custom_call.1} parent=5 // pred_check_branch
        %207 = sbr.rel (%p204) target = $region12
      $region11: #{tpu_custom_call.1} parent=5 // pred_region
        %s208 = ssub.s32 %s18, 1
      $region12: #{tpu_custom_call.1} parent=5 // pred_fallthru
        _
      %p209 = scmp.lt.s32.totalorder %s18, 2
      // Predicated region
      $region13: #{tpu_custom_call.1} parent=5 // pred_check
        %p210 = pneg %p209
      $region14: #{tpu_custom_call.1} parent=5 // pred_check_branch
        %212 = sbr.rel (%p210) target = $region16
      $region15: #{tpu_custom_call.1} parent=5 // pred_region
        // Predicated region
        $region17: #{tpu_custom_call.1} parent=15 // pred_check
          %p213 = pneg %p50
        $region18: #{tpu_custom_call.1} parent=15 // pred_check_branch
          %215 = sbr.rel (%p213) target = $region20
        $region19: #{tpu_custom_call.1} parent=15 // pred_region
          %p216 = scmp.lt.s32.totalorder %s25, 1
          %s217 = scalar_select %p216, %s25, 1
          %s218 = smul.addr %s217, 4
          %s219 = scalar_lea.vmem %s0, %s218
        $region20: #{tpu_custom_call.1} parent=15 // pred_fallthru
          _
        // Predicated region
        $region21: #{tpu_custom_call.1} parent=15 // pred_check
          %p220 = pneg %p78
        $region22: #{tpu_custom_call.1} parent=15 // pred_check_branch
          %222 = sbr.rel (%p220) target = $region24
        $region23: #{tpu_custom_call.1} parent=15 // pred_region
          %p223 = scmp.lt.s32.totalorder %s25, 1
          %s224 = scalar_select %p223, %s25, 1
          %p225 = scmp.lt.s32.totalorder %s26, 0
          %s226 = scalar_select %p225, %s26, 0
          %s227 = sadd.s32 %s226, %s224
          %s228 = smul.addr %s227, 4
          %s229 = scalar_lea.vmem %s1, %s228
        $region24: #{tpu_custom_call.1} parent=15 // pred_fallthru
          _
        // Predicated region
        $region25: #{tpu_custom_call.1} parent=15 // pred_check
          %p230 = pneg %p104
        $region26: #{tpu_custom_call.1} parent=15 // pred_check_branch
          %232 = sbr.rel (%p230) target = $region28
        $region27: #{tpu_custom_call.1} parent=15 // pred_region
          %p233 = scmp.lt.s32.totalorder %s25, 1
          %s234 = scalar_select %p233, %s25, 1
          %s235 = scalar_lea.vmem %s2, %s234
        $region28: #{tpu_custom_call.1} parent=15 // pred_fallthru
          _
        // Predicated region
        $region29: #{tpu_custom_call.1} parent=15 // pred_check
          %p236 = pneg %p132
        $region30: #{tpu_custom_call.1} parent=15 // pred_check_branch
          %238 = sbr.rel (%p236) target = $region32
        $region31: #{tpu_custom_call.1} parent=15 // pred_region
          %p239 = scmp.lt.s32.totalorder %s25, 1
          %s240 = scalar_select %p239, %s25, 1
          %p241 = scmp.lt.s32.totalorder %s26, 0
          %s242 = scalar_select %p241, %s26, 0
          %s243 = sadd.s32 %s242, %s240
          %s244 = smul.addr %s243, 8
          %s245 = scalar_lea.vmem %s3, %s244
        $region32: #{tpu_custom_call.1} parent=15 // pred_fallthru
          _
      $region16: #{tpu_custom_call.1} parent=5 // pred_fallthru
        _
      %p246 = scmp.le.s32.totalorder 1, %s18
      %p247 = scmp.lt.s32.totalorder %s18, 3
      %p248 = pnand %p246, %p247
      %p249 = pneg %p248
      // Predicated region
      $region33: #{tpu_custom_call.1} parent=5 // pred_check
        _
      $region34: #{tpu_custom_call.1} parent=5 // pred_check_branch
        %251 = sbr.rel (%p248) target = $region36
      $region35: #{tpu_custom_call.1} parent=5 // pred_region
        %s252 = ssub.s32 %s18, 1
        %p253 = scmp.lt.s32.totalorder %s27, 1
        %s254 = scalar_select %p253, %s27, 1
        %s255 = smul.addr %s254, 4
        %s256 = scalar_lea.vmem %s0, %s255
        %p257 = pneg %p56
        %p258 = pneg %p53
        %p259 = scmp.lt.s32.totalorder %s27, 1
        %s260 = scalar_select %p259, %s27, 1
        %p261 = scmp.lt.s32.totalorder %s28, 0
        %s262 = scalar_select %p261, %s28, 0
        %s263 = sadd.s32 %s262, %s260
        %s264 = smul.addr %s263, 4
        %s265 = scalar_lea.vmem %s1, %s264
        %p266 = pneg %p84
        %p267 = pneg %p81
        %p268 = scmp.lt.s32.totalorder %s27, 1
        %s269 = scalar_select %p268, %s27, 1
        %s270 = scalar_lea.vmem %s2, %s269
        %p271 = pneg %p110
        %p272 = pneg %p107
        %p273 = scmp.lt.s32.totalorder %s27, 1
        %s274 = scalar_select %p273, %s27, 1
        %p275 = scmp.lt.s32.totalorder %s28, 0
        %s276 = scalar_select %p275, %s28, 0
        %s277 = sadd.s32 %s276, %s274
        %s278 = smul.addr %s277, 8
        %s279 = scalar_lea.vmem %s3, %s278
        %p280 = pneg %p138
        %p281 = pneg %p135
        %p282 = pneg %p166
        %p283 = pneg %p163
        %s284 = sand.u32 %s153, 1
        %s285 = scalar_lea.sflag [#allocation3], %s284
        %s286 = sand.u32 %s153, 1
        %s287 = smul.addr %s286, 8
        %s288 = scalar_lea.vmem [#allocation2], %s287
        %p289 = pneg %p194
        %p290 = pneg %p191
        %s291 = sand.u32 %s181, 1
        %s292 = scalar_lea.sflag [#allocation5], %s291
        %s293 = sand.u32 %s181, 1
        %s294 = smul.addr %s293, 4
        %s295 = scalar_lea.vmem [#allocation4], %s294
        %p296 = scmp.lt.s32.totalorder %s27, 1
        %s297 = scalar_select %p296, %s27, 1
        %s298 = smul.addr %s297, 4
        %s299 = scalar_lea.vmem %s0, %s298
        %p300 = scmp.lt.s32.totalorder %s27, 1
        %s301 = scalar_select %p300, %s27, 1
        %p302 = scmp.lt.s32.totalorder %s28, 0
        %s303 = scalar_select %p302, %s28, 0
        %s304 = sadd.s32 %s303, %s301
        %s305 = smul.addr %s304, 4
        %s306 = scalar_lea.vmem %s1, %s305
        %p307 = scmp.lt.s32.totalorder %s27, 1
        %s308 = scalar_select %p307, %s27, 1
        %s309 = scalar_lea.vmem %s2, %s308
        %p310 = scmp.lt.s32.totalorder %s27, 1
        %s311 = scalar_select %p310, %s27, 1
        %p312 = scmp.lt.s32.totalorder %s28, 0
        %s313 = scalar_select %p312, %s28, 0
        %s314 = sadd.s32 %s313, %s311
        %s315 = smul.addr %s314, 8
        %s316 = scalar_lea.vmem %s3, %s315
        %v318 = vld [vmem:[%s299] sm:$0xf]
        %v319 = vld [vmem:[%s306] sm:$0xf]
        %v320 = vld [vmem:[%s309] sm:$0x1]
        %v321 = vld [vmem:[%s316] sm:$0xff]
        %vm322 = vcmask 261120
        %v324 = vsel %vm322, %v319, 0
        %v327 = vsel %vm322, %v318, 0
        %329 = vmatprep.subr.bf16.mxu0 0
        %330 = vmatpush1.bf16.xpose.msra.mxu0 %v327
        %331 = vmatprep.subr.bf16.mxu0 0
        %332 = vmatpush1.bf16.xpose.msra.mxu0 0
        %333 = vmatprep.subr.bf16.mxu0 0
        %334 = vmatpush1.bf16.xpose.msra.mxu0 0
        %335 = vmatprep.subr.bf16.mxu0 0
        %336 = vmatpush1.bf16.xpose.msra.mxu0 0
        %337 = vmatprep.subr.bf16.mxu0 0
        %338 = vmatpush1.bf16.xpose.msra.mxu0 0
        %339 = vmatprep.subr.bf16.mxu0 0
        %340 = vmatpush1.bf16.xpose.msra.mxu0 0
        %341 = vmatprep.subr.bf16.mxu0 0
        %342 = vmatpush1.bf16.xpose.msra.mxu0 0
        %343 = vmatprep.subr.bf16.mxu0 0
        %344 = vmatpush1.bf16.xpose.msra.mxu0 0
        %345 = vmatprep.subr.bf16.mxu0 0
        %346 = vmatpush1.bf16.xpose.msra.mxu0 0
        %347 = vmatprep.subr.bf16.mxu0 0
        %348 = vmatpush1.bf16.xpose.msra.mxu0 0
        %349 = vmatprep.subr.bf16.mxu0 0
        %350 = vmatpush1.bf16.xpose.msra.mxu0 0
        %351 = vmatprep.subr.bf16.mxu0 0
        %352 = vmatpush1.bf16.xpose.msra.mxu0 0
        %353 = vmatprep.subr.bf16.mxu0 0
        %354 = vmatpush1.bf16.xpose.msra.mxu0 0
        %355 = vmatprep.subr.bf16.mxu0 0
        %356 = vmatpush1.bf16.xpose.msra.mxu0 0
        %357 = vmatprep.subr.bf16.mxu0 0
        %358 = vmatpush1.bf16.xpose.msra.mxu0 0
        %359 = vmatprep.subr.bf16.mxu0 0
        %360 = vmatpush1.bf16.xpose.msra.mxu0 0
        %361 = vmatprep.mubr.bf16.mxu0 0
        %362 = vmatmul.mubr.bf16.gmra.mrb[0].mxu0 %v324
        %v363 = vpop.f32.mrb[0].mxu0
        %v364 = vadd.f32 0.0, %v363
        %v365 = vpop.f32.mrb[0].mxu0
        %v366 = vpop.f32.mrb[0].mxu0
        %v367 = vpop.f32.mrb[0].mxu0
        %368 = vdwg.mxu0
        %vm369 = vcmp.gt.f32.partialorder %v320, 0.5
        %v370 = vsel %vm369, 1, 0
        %v371 = vlaneseq
        %v372 = vshrl.u32 %v371, 7
        %v373 = vsub.s32 0, %v372
        %v374 = vrot.slane %v370, %v373
        %vm375 = vcmp.eq.s32.totalorder %v374, 1
        %v376 = vsel %vm375, %v364, -1e+09
        %vm377 = vcmask 64512
        %v378 = vsel %vm377, %v376, -inf
        %379 = vmax.xlane.f32.xlu0 %v378
        %v380 = vpop.xlane.xlu0 %379
        %v381 = vsub.f32 %v376, %v380
        %v382 = vmul.f32 %v381, 1.442695
        %v383 = vpow.pop %v382
        %v384 = vsel %vm377, %v383, 0.0
        %385 = vadd.xlane.f32.xlu0 %v384
        %v386 = vpop.xlane.xlu0 %385
        %v387 = vrcp.pop %v386
        %v388 = vmul.f32 %v387, %v321
        %390 = vset.pattern.permute.xlu0 0
        %391 = vperm.xlu0 %390, %v388
        %v392 = vpop.permute.xlu0 %391
        %v394 = vmul.f32 %v383, %v392
        %v395 = vpack.c.bf16 %v394, %v394
        %v397 = vsel %vm377, %v395, 0
        %vm399 = vcmask 1043456
        %v400 = vsel %vm399, %v318, 0
        %402 = vmatprep.subr.bf16.mxu0 0
        %403 = vmatpush1.bf16.msra.mxu0 %v400
        %404 = vmatprep.subr.bf16.mxu0 0
        %405 = vmatpush1.bf16.msra.mxu0 0
        %406 = vmatprep.subr.bf16.mxu0 0
        %407 = vmatpush1.bf16.msra.mxu0 0
        %408 = vmatprep.subr.bf16.mxu0 0
        %409 = vmatpush1.bf16.msra.mxu0 0
        %410 = vmatprep.subr.bf16.mxu0 0
        %411 = vmatpush1.bf16.msra.mxu0 0
        %412 = vmatprep.subr.bf16.mxu0 0
        %413 = vmatpush1.bf16.msra.mxu0 0
        %414 = vmatprep.subr.bf16.mxu0 0
        %415 = vmatpush1.bf16.msra.mxu0 0
        %416 = vmatprep.subr.bf16.mxu0 0
        %417 = vmatpush1.bf16.msra.mxu0 0
        %418 = vmatprep.subr.bf16.mxu0 0
        %419 = vmatpush1.bf16.msra.mxu0 0
        %420 = vmatprep.subr.bf16.mxu0 0
        %421 = vmatpush1.bf16.msra.mxu0 0
        %422 = vmatprep.subr.bf16.mxu0 0
        %423 = vmatpush1.bf16.msra.mxu0 0
        %424 = vmatprep.subr.bf16.mxu0 0
        %425 = vmatpush1.bf16.msra.mxu0 0
        %426 = vmatprep.subr.bf16.mxu0 0
        %427 = vmatpush1.bf16.msra.mxu0 0
        %428 = vmatprep.subr.bf16.mxu0 0
        %429 = vmatpush1.bf16.msra.mxu0 0
        %430 = vmatprep.subr.bf16.mxu0 0
        %431 = vmatpush1.bf16.msra.mxu0 0
        %432 = vmatprep.subr.bf16.mxu0 0
        %433 = vmatpush1.bf16.msra.mxu0 0
        %434 = vmatprep.mubr.bf16.mxu0 0
        %435 = vmatmul.mubr.bf16.gmra.mrb[0].mxu0 %v397
        %v436 = vpop.f32.mrb[0].mxu0
        %v437 = vadd.f32 0.0, %v436
        %v438 = vpop.f32.mrb[0].mxu0
        %v439 = vpop.f32.mrb[0].mxu0
        %v440 = vpop.f32.mrb[0].mxu0
        %441 = vdwg.mxu0
        %442 = vst.msk [vmem:[%s288] sm:$0xff] %vm322, %v437
        %vm443 = vcmask 60416
        %444 = vst.msk [vmem:[%s295] sm:$0xf] %vm443, %v395
        %s445 = sand.u32 %s153, 1
        %s446 = scalar_lea.sflag [#allocation3], %s445
        %s447 = sand.u32 %s153, 1
        %s448 = smul.addr %s447, 8
        %s449 = scalar_lea.vmem [#allocation2], %s448
        %s450 = sand.u32 %s181, 1
        %s451 = scalar_lea.sflag [#allocation5], %s450
        %s452 = sand.u32 %s181, 1
        %s453 = smul.addr %s452, 4
        %s454 = scalar_lea.vmem [#allocation4], %s453
        // Predicated region
        $region37: #{tpu_custom_call.1} parent=35 // pred_check
          %p455 = pneg %p163
        $region38: #{tpu_custom_call.1} parent=35 // pred_check_branch
          %457 = sbr.rel (%p455) target = $region40
        $region39: #{tpu_custom_call.1} parent=35 // pred_region
          %s459 = ssub.s32 128, 128
          %460 = vsyncadd %s446, %s459
          %s461 = sadd.s32 %s28, %s27
          %s462 = smul.addr %s461, 128
          %s463 = scalar_lea.hbm %s4, %s462
          %s465 = sshll.u32 %s449, 4
          %s466 = int_to_ptr.vmem [resolvable:$true] %s465
          %468 = dma.vmem_to_hbm [thread:$0]  %s466, 128, %s463, %s446
        $region40: #{tpu_custom_call.1} parent=35 // pred_fallthru
          _
        // Predicated region
        $region41: #{tpu_custom_call.1} parent=35 // pred_check
          %p469 = pneg %p191
        $region42: #{tpu_custom_call.1} parent=35 // pred_check_branch
          %471 = sbr.rel (%p469) target = $region44
        $region43: #{tpu_custom_call.1} parent=35 // pred_region
          %s473 = ssub.s32 64, 64
          %474 = vsyncadd %s451, %s473
          %s475 = sadd.s32 %s28, %s27
          %s476 = smul.addr %s475, 64
          %s477 = scalar_lea.hbm %s5, %s476
          %s479 = sshll.u32 %s454, 4
          %s480 = int_to_ptr.vmem [resolvable:$true] %s479
          %482 = dma.vmem_to_hbm [thread:$0]  %s480, 64, %s477, %s451
        $region44: #{tpu_custom_call.1} parent=35 // pred_fallthru
          _
      $region36: #{tpu_custom_call.1} parent=5 // pred_fallthru
        _
      %p483 = scmp.le.s32.totalorder 2, %s18
      // Predicated region
      $region45: #{tpu_custom_call.1} parent=5 // pred_check
        %p484 = pneg %p483
      $region46: #{tpu_custom_call.1} parent=5 // pred_check_branch
        %486 = sbr.rel (%p484) target = $region48
      $region47: #{tpu_custom_call.1} parent=5 // pred_region
        %s487 = ssub.s32 %s18, 2
        // Predicated region
        $region49: #{tpu_custom_call.1} parent=47 // pred_check
          %p488 = pneg %p169
        $region50: #{tpu_custom_call.1} parent=47 // pred_check_branch
          %490 = sbr.rel (%p488) target = $region52
        $region51: #{tpu_custom_call.1} parent=47 // pred_region
          %s491 = sand.u32 %s154, 1
          %s492 = scalar_lea.sflag [#allocation3], %s491
          %s493 = sand.u32 %s154, 1
          %s494 = smul.addr %s493, 8
          %s495 = scalar_lea.vmem [#allocation2], %s494
          %496 = dma.done %s492, 128
        $region52: #{tpu_custom_call.1} parent=47 // pred_fallthru
          _
        // Predicated region
        $region53: #{tpu_custom_call.1} parent=47 // pred_check
          %p497 = pneg %p197
        $region54: #{tpu_custom_call.1} parent=47 // pred_check_branch
          %499 = sbr.rel (%p497) target = $region56
        $region55: #{tpu_custom_call.1} parent=47 // pred_region
          %s500 = sand.u32 %s182, 1
          %s501 = scalar_lea.sflag [#allocation5], %s500
          %s502 = sand.u32 %s182, 1
          %s503 = smul.addr %s502, 4
          %s504 = scalar_lea.vmem [#allocation4], %s503
          %505 = dma.done %s501, 64
        $region56: #{tpu_custom_call.1} parent=47 // pred_fallthru
          _
      $region48: #{tpu_custom_call.1} parent=5 // pred_fallthru
        _
    $region6: #{tpu_custom_call.1} parent=1 // loop_footer
      %s22 = sadd.s32 1, %s18
    $region7: #{tpu_custom_call.1} parent=1 // loop_footer_branch
      %17 = sbr.rel target = $region3
    $region8: #{tpu_custom_call.1} parent=1 // loop_exit
      _
    %506 = vsyncpa [#allocation3], 1
    %s507 = scalar_lea.sflag [#allocation3], 1
    %508 = vsyncpa %s507, 1
    %509 = vsyncpa [#allocation5], 1
    %s510 = scalar_lea.sflag [#allocation5], 1
    %511 = vsyncpa %s510, 1

</llo_original>
